<compile_context>
chip_gen: v6e
topology: v6e:2x2x1
jax: 0.10.0
libtpu: 0.0.40
codegen_flags: <defaults>
</compile_context>

<pallas_src>
import functools

import jax
import jax.numpy as jnp
from jax import lax
from jax.experimental import pallas as pl
from jax.experimental.pallas import tpu as pltpu

LN_EPS = 1e-5
_INV_SQRT2 = 0.7071067811865476


# ----------------------------------------------------------------------------- utils
def _round_up(n, m):
    return ((n + m - 1) // m) * m


def _chunk(total, target):
    """Largest multiple of 128 <= target that divides `total` (total % 128 == 0)."""
    c = min(target, total)
    while total % c:
        c -= 128
    return c


def _tpu_vmem_capacity_bytes():
    try:
        cap = getattr(pltpu.get_tpu_info(), "vmem_capacity_bytes", None)
        if cap:
            return int(cap)
    except Exception:
        pass
    return 64 * 1024 * 1024  # conservative (v7x per-TensorCore)


def _supports_buffered():
    """Probe whether BlockSpec(pipeline_mode=pl.Buffered(1)) is constructible."""
    try:
        pl.BlockSpec((8, 128), lambda i: (0, 0), pipeline_mode=pl.Buffered(1))
        return True
    except Exception:
        return False


def _const_spec(shape, index_map, single_buffer):
    # Constant index_map -> a second pipeline buffer is pure wasted VMEM.
    if single_buffer:
        return pl.BlockSpec(shape, index_map, pipeline_mode=pl.Buffered(1))
    return pl.BlockSpec(shape, index_map)


def _gelu(h, approx):
    if approx:
        return jax.nn.gelu(h, approximate=True)    # tanh path -> EUP slot
    return 0.5 * h * (1.0 + lax.erf(h * _INV_SQRT2))  # exact, matches nn.GELU()


def _layernorm_bf16(x_f32, gamma, beta, inv_d, true_d):
    """Two-pass LayerNorm over the true D features of a zero-padded (tr, Dp) tile."""
    mean = jnp.sum(x_f32, axis=-1, keepdims=True) * inv_d
    xc = x_f32 - mean
    if true_d != x_f32.shape[-1]:
        col = lax.broadcasted_iota(jnp.int32, x_f32.shape, 1)
        xc = jnp.where(col < true_d, xc, 0.0)      # re-zero padded lanes
    var = jnp.sum(xc * xc, axis=-1, keepdims=True) * inv_d
    xn = xc * lax.rsqrt(var + LN_EPS)
    xn = xn * gamma + beta                          # padded gamma/beta are 0
    return xn.astype(jnp.bfloat16)


# ----------------------------------------------------------------------------- kernels
def mlp_subblock_kernel(x_ref, gamma_ref, beta_ref, w1_ref, b1_ref, w2_ref, b2_ref,
                        o_ref, *, inv_d, true_d, h_chunk, n_chunks, approx_gelu):
    """Resident-weights path: whole bf16 W1/W2 live in VMEM, H chunked in-kernel."""
    xn_bf = _layernorm_bf16(x_ref[...].astype(jnp.float32),
                            gamma_ref[...], beta_ref[...], inv_d, true_d)

    acc = jnp.zeros(o_ref.shape, jnp.float32)
    for c in range(n_chunks):                       # static slices -> zero-cost views
        lo = c * h_chunk
        h = jnp.dot(xn_bf, w1_ref[:, lo:lo + h_chunk],
                    preferred_element_type=jnp.float32)
        h = _gelu(h + b1_ref[:, lo:lo + h_chunk], approx_gelu)
        acc = acc + jnp.dot(h.astype(jnp.bfloat16), w2_ref[lo:lo + h_chunk, :],
                            preferred_element_type=jnp.float32)

    o_ref[...] = (acc + b2_ref[...]).astype(o_ref.dtype)


def mlp_subblock_stream_kernel(x_ref, gamma_ref, beta_ref, w1_ref, b1_ref, w2_ref,
                               b2_ref, o_ref, xn_scr, acc_scr,
                               *, inv_d, true_d, approx_gelu):
    """Streaming-weights path: grid axis 1 walks H tiles; weights DMA'd per tile."""
    k = pl.program_id(1)

    @pl.when(k == 0)
    def _():
        xn_scr[...] = _layernorm_bf16(x_ref[...].astype(jnp.float32),
                                      gamma_ref[...], beta_ref[...], inv_d, true_d)
        acc_scr[...] = jnp.zeros_like(acc_scr)

    h = jnp.dot(xn_scr[...], w1_ref[...], preferred_element_type=jnp.float32)
    h = _gelu(h + b1_ref[...], approx_gelu)
    acc_scr[...] += jnp.dot(h.astype(jnp.bfloat16), w2_ref[...],
                            preferred_element_type=jnp.float32)

    @pl.when(k == pl.num_programs(1) - 1)
    def _():
        o_ref[...] = (acc_scr[...] + b2_ref[...]).astype(o_ref.dtype)


# ----------------------------------------------------------------------------- callers
def _call_resident(x2d, p, *, row_tile, vmem_limit, single_buffer, approx_gelu):
    rp, Dp = x2d.shape
    Hp = p["Hp"]
    hc = _chunk(Hp, 512)

    def cs(shape):
        return _const_spec(shape, lambda i: (0, 0), single_buffer)

    kernel = functools.partial(
        mlp_subblock_kernel, inv_d=1.0 / p["D"], true_d=p["D"],
        h_chunk=hc, n_chunks=Hp // hc, approx_gelu=approx_gelu)

    flops = 4 * rp * Dp * Hp
    bytes_accessed = (x2d.size * 4 + rp * Dp * 4
                      + (p["w1"].size + p["w2"].size) * 2 + (3 * Dp + Hp) * 4)

    return pl.pallas_call(
        kernel,
        out_shape=jax.ShapeDtypeStruct((rp, Dp), x2d.dtype),
        grid_spec=pltpu.PrefetchScalarGridSpec(
            num_scalar_prefetch=0,
            grid=(rp // row_tile,),
            in_specs=[pl.BlockSpec((row_tile, Dp), lambda i: (i, 0)),   # x tile
                      cs((1, Dp)), cs((1, Dp)),                         # gamma, beta
                      cs((Dp, Hp)), cs((1, Hp)),                        # w1, b1
                      cs((Hp, Dp)), cs((1, Dp))],                       # w2, b2
            out_specs=pl.BlockSpec((row_tile, Dp), lambda i: (i, 0))),
        compiler_params=pltpu.CompilerParams(
            dimension_semantics=("parallel",),
            vmem_limit_bytes=vmem_limit),
        cost_estimate=pl.CostEstimate(flops=flops, transcendentals=rp * Hp,
                                      bytes_accessed=bytes_accessed),
    )(x2d, p["gamma"], p["beta"], p["w1"], p["b1"], p["w2"], p["b2"])


def _call_streaming(x2d, p, *, row_tile, h_tile, vmem_limit, single_buffer,
                    approx_gelu):
    rp, Dp = x2d.shape
    Hp = p["Hp"]
    n_row_tiles = rp // row_tile

    def cs(shape):
        return _const_spec(shape, lambda i, k: (0, 0), single_buffer)

    kernel = functools.partial(mlp_subblock_stream_kernel, inv_d=1.0 / p["D"],
                               true_d=p["D"], approx_gelu=approx_gelu)

    flops = 4 * rp * Dp * Hp
    bytes_accessed = (x2d.size * 4 + rp * Dp * 4
                      + (p["w1"].size + p["w2"].size) * 2 * n_row_tiles
                      + (3 * Dp + Hp) * 4)

    return pl.pallas_call(
        kernel,
        out_shape=jax.ShapeDtypeStruct((rp, Dp), x2d.dtype),
        grid_spec=pltpu.PrefetchScalarGridSpec(
            num_scalar_prefetch=0,
            grid=(n_row_tiles, Hp // h_tile),
            in_specs=[pl.BlockSpec((row_tile, Dp), lambda i, k: (i, 0)),  # x tile
                      cs((1, Dp)), cs((1, Dp)),                           # gamma, beta
                      pl.BlockSpec((Dp, h_tile), lambda i, k: (0, k)),    # w1 tile
                      pl.BlockSpec((1, h_tile), lambda i, k: (0, k)),     # b1 tile
                      pl.BlockSpec((h_tile, Dp), lambda i, k: (k, 0)),    # w2 tile
                      cs((1, Dp))],                                       # b2
            out_specs=pl.BlockSpec((row_tile, Dp), lambda i, k: (i, 0)),
            scratch_shapes=[pltpu.VMEM((row_tile, Dp), jnp.bfloat16),     # xn cache
                            pltpu.VMEM((row_tile, Dp), jnp.float32)]),    # accumulator
        compiler_params=pltpu.CompilerParams(
            dimension_semantics=("parallel", "arbitrary"),
            vmem_limit_bytes=vmem_limit),
        cost_estimate=pl.CostEstimate(flops=flops, transcendentals=rp * Hp,
                                      bytes_accessed=bytes_accessed),
    )(x2d, p["gamma"], p["beta"], p["w1"], p["b1"], p["w2"], p["b2"])


# ----------------------------------------------------------------------------- wrapper
def prepare_params(params, *, lane=128):
    """Pad + bf16-cast the weights ONCE (hoist out of the per-call hot path)."""
    D, H = params["w1"].shape
    Dp, Hp = _round_up(D, lane), _round_up(H, lane)
    return {
        "prepared": True, "D": D, "H": H, "Dp": Dp, "Hp": Hp,
        "gamma": jnp.pad(params["gamma"].astype(jnp.float32), (0, Dp - D)).reshape(1, Dp),
        "beta": jnp.pad(params["beta"].astype(jnp.float32), (0, Dp - D)).reshape(1, Dp),
        "w1": jnp.pad(params["w1"], ((0, Dp - D), (0, Hp - H))).astype(jnp.bfloat16),
        "b1": jnp.pad(params["b1"].astype(jnp.float32), (0, Hp - H)).reshape(1, Hp),
        "w2": jnp.pad(params["w2"], ((0, Hp - H), (0, Dp - D))).astype(jnp.bfloat16),
        "b2": jnp.pad(params["b2"].astype(jnp.float32), (0, Dp - D)).reshape(1, Dp),
    }


def mlp_subblock(x, params, *, row_tile=None, lane=128, approx_gelu=False,
                 force_stream=False, stream_h_tile=None):
    """x: (B, S, D) float32. params: raw init_params dict or prepare_params dict."""
    if not (isinstance(params, dict) and params.get("prepared")):
        # Prefer calling prepare_params() once at init time; doing it here adds a
        # per-call weight pad + bf16 cast (HBM read/write of both weight matrices).
        params = prepare_params(params, lane=lane)
    p = params

    B, S, D = x.shape
    assert D == p["D"], "x feature dim does not match params"
    Dp, Hp = p["Dp"], p["Hp"]
    rows = B * S

    vmem_limit = (_tpu_vmem_capacity_bytes() * 3) // 4   # ~25% headroom
    if row_tile is None:
        row_tile = 512 if vmem_limit >= 80 * 1024 * 1024 else 256

    tr = min(row_tile, _round_up(rows, 8))
    if rows > 8 and rows <= tr:
        # Ensure >=2 steps on the 'parallel' row axis (keeps both v7x TCs busy).
        tr = _round_up((rows + 1) // 2, 8)
    rp = _round_up(rows, tr)

    x2d = jnp.pad(x.reshape(rows, D).astype(jnp.float32),
                  ((0, rp - rows), (0, Dp - D)))

    single_buffer = _supports_buffered()

    def run(sb):
        w_bytes = 2 * (p["w1"].size + p["w2"].size)       # resident bf16 weights
        if not sb:
            w_bytes *= 2                                  # double-buffered constants
        if force_stream or w_bytes > vmem_limit // 2:
            h_tile = stream_h_tile or _chunk(Hp, 512)
            return _call_streaming(x2d, p, row_tile=tr, h_tile=h_tile,
                                   vmem_limit=vmem_limit, single_buffer=sb,
                                   approx_gelu=approx_gelu)
        return _call_resident(x2d, p, row_tile=tr, vmem_limit=vmem_limit,
                              single_buffer=sb, approx_gelu=approx_gelu)

    try:
        out2d = run(single_buffer)
    except pltpu.LoweringException:
        # Narrow fallback: retry with default double-buffered constant specs
        # (the VMEM check inside run() may then route to the streaming path).
        out2d = run(False)

    return out2d[:rows, :D].reshape(B, S, D)


# ----------------------------------------------------------------------------- init / ref
def init_params(key, dim, mlp_ratio=4):
    hidden = dim * mlp_ratio
    k1, k2, k3, k4 = jax.random.split(key, 4)
    # nn.Linear default: U(-1/sqrt(fan_in), 1/sqrt(fan_in)); LN: gamma=1, beta=0.
    lim1 = 1.0 / jnp.sqrt(dim)
    lim2 = 1.0 / jnp.sqrt(hidden)
    return {
        "gamma": jnp.ones((dim,), jnp.float32),
        "beta": jnp.zeros((dim,), jnp.float32),
        "w1": jax.random.uniform(k1, (dim, hidden), jnp.float32, -lim1, lim1),
        "b1": jax.random.uniform(k2, (hidden,), jnp.float32, -lim1, lim1),
        "w2": jax.random.uniform(k3, (hidden, dim), jnp.float32, -lim2, lim2),
        "b2": jax.random.uniform(k4, (dim,), jnp.float32, -lim2, lim2),
    }


def mlp_subblock_ref(x, p):
    mean = jnp.mean(x, axis=-1, keepdims=True)
    var = jnp.mean((x - mean) ** 2, axis=-1, keepdims=True)
    xn = (x - mean) / jnp.sqrt(var + LN_EPS) * p["gamma"] + p["beta"]
    h = xn @ p["w1"] + p["b1"]
    h = 0.5 * h * (1.0 + lax.erf(h / jnp.sqrt(2.0)))
    return h @ p["w2"] + p["b2"]


# ----------------------------------------------------------------------------- main
if __name__ == "__main__":
    key = jax.random.PRNGKey(0)
    kx, kp, kx2, kp2 = jax.random.split(key, 4)

    # Test 1: default (resident-weights) path; D=32 exercises lane padding + mask.
    B, S, D, RATIO = 2, 8, 32, 4
    x = jax.random.normal(kx, (B, S, D), jnp.float32)
    raw = init_params(kp, D, RATIO)
    prepared = prepare_params(raw)                 # weight pad/cast hoisted (once)
    out = jax.block_until_ready(mlp_subblock(x, prepared))
    ref = mlp_subblock_ref(x, raw)
    assert out.shape == (B, S, D)
    # bf16 matmul inputs with f32 accumulation -> ~1e-2 relative error vs f32 ref.
    assert jnp.allclose(out, ref, rtol=3e-2, atol=3e-2), "resident path mismatch"

    # Test 2: weight-streaming path (the large-D / v7x variant), forced at small
    # shape with two streamed hidden tiles so the H-reduction accumulator is hit.
    D2 = 64
    x2 = jax.random.normal(kx2, (B, S, D2), jnp.float32)
    raw2 = init_params(kp2, D2, RATIO)
    out2 = jax.block_until_ready(
        mlp_subblock(x2, prepare_params(raw2), force_stream=True, stream_h_tile=128))
    ref2 = mlp_subblock_ref(x2, raw2)
    assert jnp.allclose(out2, ref2, rtol=3e-2, atol=3e-2), "streaming path mismatch"

    print("KERNEL_OK")
</pallas_src>

<mosaic_0001>
module attributes {stable_mosaic.version = 11 : i64} {
  func.func @mlp_subblock_kernel(%arg0: i32, %arg1: memref<8x128xf32, #tpu.memory_space<vmem>>, %arg2: memref<1x128xf32, #tpu.memory_space<vmem>>, %arg3: memref<1x128xf32, #tpu.memory_space<vmem>>, %arg4: memref<128x128xbf16, #tpu.memory_space<vmem>>, %arg5: memref<1x128xf32, #tpu.memory_space<vmem>>, %arg6: memref<128x128xbf16, #tpu.memory_space<vmem>>, %arg7: memref<1x128xf32, #tpu.memory_space<vmem>>, %arg8: memref<8x128xf32, #tpu.memory_space<vmem>>) attributes {dimension_semantics = [#tpu.dimension_semantics<parallel>], iteration_bounds = array<i64: 2>, scalar_prefetch = 0 : i64, scratch_operands = 0 : i64, tpu.core_type = #tpu.core_type<tc>, window_params = [{transform_indices = @transform_0, window_bounds = array<i64: 8, 128>}, {pipeline_mode = #tpu.pipeline_mode<synchronous>, transform_indices = @transform_1, window_bounds = array<i64: 1, 128>}, {pipeline_mode = #tpu.pipeline_mode<synchronous>, transform_indices = @transform_2, window_bounds = array<i64: 1, 128>}, {pipeline_mode = #tpu.pipeline_mode<synchronous>, transform_indices = @transform_3, window_bounds = array<i64: 128, 128>}, {pipeline_mode = #tpu.pipeline_mode<synchronous>, transform_indices = @transform_4, window_bounds = array<i64: 1, 128>}, {pipeline_mode = #tpu.pipeline_mode<synchronous>, transform_indices = @transform_5, window_bounds = array<i64: 128, 128>}, {pipeline_mode = #tpu.pipeline_mode<synchronous>, transform_indices = @transform_6, window_bounds = array<i64: 1, 128>}, {transform_indices = @transform_7, window_bounds = array<i64: 8, 128>}]} {
    %c0 = arith.constant 0 : index
    %c0_0 = arith.constant 0 : index
    %0 = vector.load %arg1[%c0, %c0_0] : memref<8x128xf32, #tpu.memory_space<vmem>>, vector<8x128xf32>
    %c0_1 = arith.constant 0 : index
    %c0_2 = arith.constant 0 : index
    %1 = vector.load %arg2[%c0_1, %c0_2] : memref<1x128xf32, #tpu.memory_space<vmem>>, vector<1x128xf32>
    %c0_3 = arith.constant 0 : index
    %c0_4 = arith.constant 0 : index
    %2 = vector.load %arg3[%c0_3, %c0_4] : memref<1x128xf32, #tpu.memory_space<vmem>>, vector<1x128xf32>
    %cst = arith.constant dense<0.000000e+00> : vector<8xf32>
    %3 = vector.multi_reduction <add>, %0, %cst [1] : vector<8x128xf32> to vector<8xf32>
    %4 = vector.shape_cast %3 : vector<8xf32> to vector<8x1xf32>
    %cst_5 = arith.constant 3.125000e-02 : f32
    %5 = vector.broadcast %cst_5 : f32 to vector<8x1xf32>
    %6 = arith.mulf %4, %5 : vector<8x1xf32>
    %7 = vector.broadcast %6 : vector<8x1xf32> to vector<8x128xf32>
    %8 = arith.subf %0, %7 : vector<8x128xf32>
    %9 = tpu.iota {dimensions = array<i32: 1>} : vector<8x128xi32>
    %c32_i32 = arith.constant 32 : i32
    %10 = vector.broadcast %c32_i32 : i32 to vector<8x128xi32>
    %11 = arith.cmpi slt, %9, %10 : vector<8x128xi32>
    %cst_6 = arith.constant 0.000000e+00 : f32
    %12 = vector.broadcast %cst_6 : f32 to vector<8x128xf32>
    %13 = arith.select %11, %8, %12 : vector<8x128xi1>, vector<8x128xf32>
    %14 = arith.mulf %13, %13 : vector<8x128xf32>
    %cst_7 = arith.constant dense<0.000000e+00> : vector<8xf32>
    %15 = vector.multi_reduction <add>, %14, %cst_7 [1] : vector<8x128xf32> to vector<8xf32>
    %16 = vector.shape_cast %15 : vector<8xf32> to vector<8x1xf32>
    %cst_8 = arith.constant 3.125000e-02 : f32
    %17 = vector.broadcast %cst_8 : f32 to vector<8x1xf32>
    %18 = arith.mulf %16, %17 : vector<8x1xf32>
    %cst_9 = arith.constant 9.99999974E-6 : f32
    %19 = vector.broadcast %cst_9 : f32 to vector<8x1xf32>
    %20 = arith.addf %18, %19 : vector<8x1xf32>
    %21 = math.rsqrt %20 : vector<8x1xf32>
    %22 = vector.broadcast %21 : vector<8x1xf32> to vector<8x128xf32>
    %23 = arith.mulf %13, %22 : vector<8x128xf32>
    %24 = vector.broadcast %1 : vector<1x128xf32> to vector<8x128xf32>
    %25 = arith.mulf %23, %24 : vector<8x128xf32>
    %26 = vector.broadcast %2 : vector<1x128xf32> to vector<8x128xf32>
    %27 = arith.addf %25, %26 : vector<8x128xf32>
    %28 = arith.truncf %27 : vector<8x128xf32> to vector<8x128xbf16>
    %cst_10 = arith.constant 0.000000e+00 : f32
    %29 = vector.broadcast %cst_10 : f32 to vector<8x128xf32>
    %c0_11 = arith.constant 0 : index
    %c0_12 = arith.constant 0 : index
    %30 = vector.load %arg4[%c0_11, %c0_12] : memref<128x128xbf16, #tpu.memory_space<vmem>>, vector<128x128xbf16>
    %cst_13 = arith.constant dense<0.000000e+00> : vector<8x128xf32>
    %31 = tpu.matmul %28, %30, %cst_13 {dimension_numbers = #tpu.dot_dimension_numbers<[1], [0], [0], [1], [0, 0, 1, 1], [], []>} : vector<8x128xbf16>, vector<128x128xbf16>, vector<8x128xf32> -> vector<8x128xf32>
    %c0_14 = arith.constant 0 : index
    %c0_15 = arith.constant 0 : index
    %32 = vector.load %arg5[%c0_14, %c0_15] : memref<1x128xf32, #tpu.memory_space<vmem>>, vector<1x128xf32>
    %33 = vector.broadcast %32 : vector<1x128xf32> to vector<8x128xf32>
    %34 = arith.addf %31, %33 : vector<8x128xf32>
    %cst_16 = arith.constant 5.000000e-01 : f32
    %35 = vector.broadcast %cst_16 : f32 to vector<8x128xf32>
    %36 = arith.mulf %35, %34 : vector<8x128xf32>
    %cst_17 = arith.constant 0.707106769 : f32
    %37 = vector.broadcast %cst_17 : f32 to vector<8x128xf32>
    %38 = arith.mulf %34, %37 : vector<8x128xf32>
    %39 = math.erf %38 : vector<8x128xf32>
    %cst_18 = arith.constant 1.000000e+00 : f32
    %40 = vector.broadcast %cst_18 : f32 to vector<8x128xf32>
    %41 = arith.addf %40, %39 : vector<8x128xf32>
    %42 = arith.mulf %36, %41 : vector<8x128xf32>
    %43 = arith.truncf %42 : vector<8x128xf32> to vector<8x128xbf16>
    %c0_19 = arith.constant 0 : index
    %c0_20 = arith.constant 0 : index
    %44 = vector.load %arg6[%c0_19, %c0_20] : memref<128x128xbf16, #tpu.memory_space<vmem>>, vector<128x128xbf16>
    %cst_21 = arith.constant dense<0.000000e+00> : vector<8x128xf32>
    %45 = tpu.matmul %43, %44, %cst_21 {dimension_numbers = #tpu.dot_dimension_numbers<[1], [0], [0], [1], [0, 0, 1, 1], [], []>} : vector<8x128xbf16>, vector<128x128xbf16>, vector<8x128xf32> -> vector<8x128xf32>
    %46 = arith.addf %29, %45 : vector<8x128xf32>
    %c0_22 = arith.constant 0 : index
    %c0_23 = arith.constant 0 : index
    %47 = vector.load %arg7[%c0_22, %c0_23] : memref<1x128xf32, #tpu.memory_space<vmem>>, vector<1x128xf32>
    %48 = vector.broadcast %47 : vector<1x128xf32> to vector<8x128xf32>
    %49 = arith.addf %46, %48 : vector<8x128xf32>
    %c0_24 = arith.constant 0 : index
    %c0_25 = arith.constant 0 : index
    %50 = vector.load %arg8[%c0_24, %c0_25] : memref<8x128xf32, #tpu.memory_space<vmem>>, vector<8x128xf32>
    tpu.vector_store %arg8[%c0_24, %c0_25], %49 {strides = array<i32>} : memref<8x128xf32, #tpu.memory_space<vmem>>, vector<8x128xf32>,
    return
  }
  func.func @transform_0(%arg0: i32) -> (i32, i32) {
    %c0_i32 = arith.constant 0 : i32
    %c0_i32_0 = arith.constant 0 : i32
    return %arg0, %c0_i32 : i32, i32
  }
  func.func @transform_1(%arg0: i32) -> (i32, i32) {
    %c0_i32 = arith.constant 0 : i32
    %c0_i32_0 = arith.constant 0 : i32
    %c0_i32_1 = arith.constant 0 : i32
    return %c0_i32, %c0_i32_0 : i32, i32
  }
  func.func @transform_2(%arg0: i32) -> (i32, i32) {
    %c0_i32 = arith.constant 0 : i32
    %c0_i32_0 = arith.constant 0 : i32
    %c0_i32_1 = arith.constant 0 : i32
    return %c0_i32, %c0_i32_0 : i32, i32
  }
  func.func @transform_3(%arg0: i32) -> (i32, i32) {
    %c0_i32 = arith.constant 0 : i32
    %c0_i32_0 = arith.constant 0 : i32
    %c0_i32_1 = arith.constant 0 : i32
    return %c0_i32, %c0_i32_0 : i32, i32
  }
  func.func @transform_4(%arg0: i32) -> (i32, i32) {
    %c0_i32 = arith.constant 0 : i32
    %c0_i32_0 = arith.constant 0 : i32
    %c0_i32_1 = arith.constant 0 : i32
    return %c0_i32, %c0_i32_0 : i32, i32
  }
  func.func @transform_5(%arg0: i32) -> (i32, i32) {
    %c0_i32 = arith.constant 0 : i32
    %c0_i32_0 = arith.constant 0 : i32
    %c0_i32_1 = arith.constant 0 : i32
    return %c0_i32, %c0_i32_0 : i32, i32
  }
  func.func @transform_6(%arg0: i32) -> (i32, i32) {
    %c0_i32 = arith.constant 0 : i32
    %c0_i32_0 = arith.constant 0 : i32
    %c0_i32_1 = arith.constant 0 : i32
    return %c0_i32, %c0_i32_0 : i32, i32
  }
  func.func @transform_7(%arg0: i32) -> (i32, i32) {
    %c0_i32 = arith.constant 0 : i32
    %c0_i32_0 = arith.constant 0 : i32
    return %arg0, %c0_i32 : i32, i32
  }
}

</mosaic_0001>

<llo_original>
// kernel: tpu_custom_call.1
$region0: #{tpu_custom_call.1}
  #allocation0 [shape = 'u32[]', space=smem, size = 0x4, offset = 0x4, fixed_abs, tag = 'smem constant byte address 0x4 - core index']
  #allocation1 [shape = 'u32[144,128]{1,0:T(1,128)}', space=vmem, size = 0x12000, scoped, tag = 'internal scratch']
  %s0 = inlined_call_operand.hbm [shape: f32[16,128], index: 0, kind: input, shape index: {}]
  %s1 = inlined_call_operand.vmem [shape: f32[1,128], index: 1, kind: input, shape index: {}]
  %s2 = inlined_call_operand.vmem [shape: f32[1,128], index: 2, kind: input, shape index: {}]
  %s3 = inlined_call_operand.hbm [shape: bf16[128,128], index: 3, kind: input, shape index: {}]
  %s4 = inlined_call_operand.vmem [shape: f32[1,128], index: 4, kind: input, shape index: {}]
  %s5 = inlined_call_operand.hbm [shape: bf16[128,128], index: 5, kind: input, shape index: {}]
  %s6 = inlined_call_operand.vmem [shape: f32[1,128], index: 6, kind: input, shape index: {}]
  %s7 = inlined_call_operand.hbm [shape: f32[16,128], index: 7, kind: output, shape index: {}]
  %s8 = sld [smem:[#allocation0]]
  $region73: #{tpu_custom_call.1} parent=0
    _
  %s10 = ssub.s32 1, %s8
  %s11 = scalar_select 0, %s10, %s8
  $region1: #{tpu_custom_call.1} parent=0
    #allocation2 [shape = 'u8[8192]{0}', space=vmem, size = 0x2000, scoped, tag = 'input window, operand 0']
    #allocation3 [shape = 's32[2]{0}', space=sflag, size = 0x8, scoped, tag = 'scoped memory for tpu_custom_call.1']
    #allocation4 [shape = 's32[2]{0}', space=sflag, size = 0x8, scoped, tag = 'scoped memory for tpu_custom_call.1']
    #allocation5 [shape = 'u8[32768]{0}', space=vmem, size = 0x8000, scoped, tag = 'input window, operand 3, single buffered']
    #allocation6 [shape = 's32[1]{0}', space=sflag, size = 0x4, scoped, tag = 'scoped memory for tpu_custom_call.1']
    #allocation7 [shape = 'u8[32768]{0}', space=vmem, size = 0x8000, scoped, tag = 'input window, operand 5, single buffered']
    #allocation8 [shape = 'u8[8192]{0}', space=vmem, size = 0x2000, scoped, tag = 'output window, operand 0']
    %12 = vsyncpa [#allocation3], 0
    %s13 = scalar_lea.sflag [#allocation3], 1
    %14 = vsyncpa %s13, 0
    %15 = vsyncpa [#allocation6], 0
    %16 = vsyncpa [#allocation4], 0
    %s17 = scalar_lea.sflag [#allocation4], 1
    %18 = vsyncpa %s17, 0
    loop: start=0, step=1, limit=4
    $region2: #{tpu_custom_call.1} parent=1 // loop_pre_header
      _
    $region3: #{tpu_custom_call.1} parent=1 // loop_header
      %s20 = sphi 0, %s24
      %p21 = scmp.ge.s32.totalorder %s20, 4
      %s30 = sphi 0, %s32
      %s33 = sphi 0, %s30
      %s34 = sphi 0, %s33
      %s50 = sphi 0, %s34
      %s54 = sphi 0, %s54
      %s56 = sphi 0, %s54
      %s57 = sphi 0, %s56
      %s71 = sphi 0, %s57
      %s75 = sphi 0, %s75
      %s77 = sphi 0, %s75
      %s78 = sphi 0, %s77
      %s92 = sphi 0, %s78
      %s96 = sphi 0, %s96
      %s98 = sphi 0, %s96
      %s99 = sphi 0, %s98
      %s113 = sphi 0, %s99
      %s117 = sphi 0, %s117
      %s119 = sphi 0, %s117
      %s120 = sphi 0, %s119
      %s134 = sphi 0, %s120
      %s138 = sphi 0, %s138
      %s140 = sphi 0, %s138
      %s141 = sphi 0, %s140
      %s155 = sphi 0, %s141
      %s159 = sphi 0, %s159
      %s161 = sphi 0, %s159
      %s162 = sphi 0, %s161
      %s176 = sphi 0, %s162
      %s182 = sphi 0, %s184
      %s185 = sphi 0, %s182
      %s186 = sphi 0, %s185
      %s202 = sphi 0, %s186
    $region4: #{tpu_custom_call.1} parent=1 // loop_header_branch
      %23 = sbr.rel (%p21) target = $region8
    $region5: #{tpu_custom_call.1} parent=1 // loop_body
      %s25 = ssub.s32 %s20, 1
      %s26 = ssub.s32 %s20, 2
      %s27 = sadd.s32 %s20, 1
      %s28 = ssub.s32 %s20, %s27
      %p29 = scmp.eq.s32.totalorder %s28, 0
      %s31 = sadd.s32 %s30, 1
      %s32 = scalar_select %p29, %s30, %s31
      %p35 = pneg %p29
      %p36 = scmp.eq.s32.totalorder %s20, 1
      %p37 = por %p35, %p36
      %p38 = scmp.ne.s32.totalorder %s30, %s33
      %p39 = scmp.eq.s32.totalorder %s20, 0
      %p40 = por %p38, %p39
      %p41 = scmp.ne.s32.totalorder %s30, %s33
      %p42 = scmp.eq.s32.totalorder %s25, 1
      %p43 = por %p41, %p42
      %p44 = scmp.ne.s32.totalorder %s33, %s34
      %p45 = scmp.eq.s32.totalorder %s25, 0
      %p46 = por %p44, %p45
      %p47 = scmp.ne.s32.totalorder %s33, %s34
      %p48 = scmp.eq.s32.totalorder %s26, 1
      %p49 = por %p47, %p48
      %p51 = scmp.ne.s32.totalorder %s34, %s50
      %p52 = scmp.eq.s32.totalorder %s26, 0
      %p53 = por %p51, %p52
      %s55 = sadd.s32 %s54, 1
      %p58 = scmp.eq.s32.totalorder %s20, 1
      %p59 = scmp.ne.s32.totalorder %s54, %s56
      %p60 = scmp.eq.s32.totalorder %s20, 0
      %p61 = por %p59, %p60
      %p62 = scmp.ne.s32.totalorder %s54, %s56
      %p63 = scmp.eq.s32.totalorder %s25, 1
      %p64 = por %p62, %p63
      %p65 = scmp.ne.s32.totalorder %s56, %s57
      %p66 = scmp.eq.s32.totalorder %s25, 0
      %p67 = por %p65, %p66
      %p68 = scmp.ne.s32.totalorder %s56, %s57
      %p69 = scmp.eq.s32.totalorder %s26, 1
      %p70 = por %p68, %p69
      %p72 = scmp.ne.s32.totalorder %s57, %s71
      %p73 = scmp.eq.s32.totalorder %s26, 0
      %p74 = por %p72, %p73
      %s76 = sadd.s32 %s75, 1
      %p79 = scmp.eq.s32.totalorder %s20, 1
      %p80 = scmp.ne.s32.totalorder %s75, %s77
      %p81 = scmp.eq.s32.totalorder %s20, 0
      %p82 = por %p80, %p81
      %p83 = scmp.ne.s32.totalorder %s75, %s77
      %p84 = scmp.eq.s32.totalorder %s25, 1
      %p85 = por %p83, %p84
      %p86 = scmp.ne.s32.totalorder %s77, %s78
      %p87 = scmp.eq.s32.totalorder %s25, 0
      %p88 = por %p86, %p87
      %p89 = scmp.ne.s32.totalorder %s77, %s78
      %p90 = scmp.eq.s32.totalorder %s26, 1
      %p91 = por %p89, %p90
      %p93 = scmp.ne.s32.totalorder %s78, %s92
      %p94 = scmp.eq.s32.totalorder %s26, 0
      %p95 = por %p93, %p94
      %s97 = sadd.s32 %s96, 1
      %p100 = scmp.eq.s32.totalorder %s20, 1
      %p101 = scmp.ne.s32.totalorder %s96, %s98
      %p102 = scmp.eq.s32.totalorder %s20, 0
      %p103 = por %p101, %p102
      %p104 = scmp.ne.s32.totalorder %s96, %s98
      %p105 = scmp.eq.s32.totalorder %s25, 1
      %p106 = por %p104, %p105
      %p107 = scmp.ne.s32.totalorder %s98, %s99
      %p108 = scmp.eq.s32.totalorder %s25, 0
      %p109 = por %p107, %p108
      %p110 = scmp.ne.s32.totalorder %s98, %s99
      %p111 = scmp.eq.s32.totalorder %s26, 1
      %p112 = por %p110, %p111
      %p114 = scmp.ne.s32.totalorder %s99, %s113
      %p115 = scmp.eq.s32.totalorder %s26, 0
      %p116 = por %p114, %p115
      %s118 = sadd.s32 %s117, 1
      %p121 = scmp.eq.s32.totalorder %s20, 1
      %p122 = scmp.ne.s32.totalorder %s117, %s119
      %p123 = scmp.eq.s32.totalorder %s20, 0
      %p124 = por %p122, %p123
      %p125 = scmp.ne.s32.totalorder %s117, %s119
      %p126 = scmp.eq.s32.totalorder %s25, 1
      %p127 = por %p125, %p126
      %p128 = scmp.ne.s32.totalorder %s119, %s120
      %p129 = scmp.eq.s32.totalorder %s25, 0
      %p130 = por %p128, %p129
      %p131 = scmp.ne.s32.totalorder %s119, %s120
      %p132 = scmp.eq.s32.totalorder %s26, 1
      %p133 = por %p131, %p132
      %p135 = scmp.ne.s32.totalorder %s120, %s134
      %p136 = scmp.eq.s32.totalorder %s26, 0
      %p137 = por %p135, %p136
      %s139 = sadd.s32 %s138, 1
      %p142 = scmp.eq.s32.totalorder %s20, 1
      %p143 = scmp.ne.s32.totalorder %s138, %s140
      %p144 = scmp.eq.s32.totalorder %s20, 0
      %p145 = por %p143, %p144
      %p146 = scmp.ne.s32.totalorder %s138, %s140
      %p147 = scmp.eq.s32.totalorder %s25, 1
      %p148 = por %p146, %p147
      %p149 = scmp.ne.s32.totalorder %s140, %s141
      %p150 = scmp.eq.s32.totalorder %s25, 0
      %p151 = por %p149, %p150
      %p152 = scmp.ne.s32.totalorder %s140, %s141
      %p153 = scmp.eq.s32.totalorder %s26, 1
      %p154 = por %p152, %p153
      %p156 = scmp.ne.s32.totalorder %s141, %s155
      %p157 = scmp.eq.s32.totalorder %s26, 0
      %p158 = por %p156, %p157
      %s160 = sadd.s32 %s159, 1
      %p163 = scmp.eq.s32.totalorder %s20, 1
      %p164 = scmp.ne.s32.totalorder %s159, %s161
      %p165 = scmp.eq.s32.totalorder %s20, 0
      %p166 = por %p164, %p165
      %p167 = scmp.ne.s32.totalorder %s159, %s161
      %p168 = scmp.eq.s32.totalorder %s25, 1
      %p169 = por %p167, %p168
      %p170 = scmp.ne.s32.totalorder %s161, %s162
      %p171 = scmp.eq.s32.totalorder %s25, 0
      %p172 = por %p170, %p171
      %p173 = scmp.ne.s32.totalorder %s161, %s162
      %p174 = scmp.eq.s32.totalorder %s26, 1
      %p175 = por %p173, %p174
      %p177 = scmp.ne.s32.totalorder %s162, %s176
      %p178 = scmp.eq.s32.totalorder %s26, 0
      %p179 = por %p177, %p178
      %s180 = ssub.s32 %s20, %s27
      %p181 = scmp.eq.s32.totalorder %s180, 0
      %s183 = sadd.s32 %s182, 1
      %s184 = scalar_select %p181, %s182, %s183
      %p187 = pneg %p181
      %p188 = scmp.eq.s32.totalorder %s20, 1
      %p189 = por %p187, %p188
      %p190 = scmp.ne.s32.totalorder %s182, %s185
      %p191 = scmp.eq.s32.totalorder %s20, 0
      %p192 = por %p190, %p191
      %p193 = scmp.ne.s32.totalorder %s182, %s185
      %p194 = scmp.eq.s32.totalorder %s25, 1
      %p195 = por %p193, %p194
      %p196 = scmp.ne.s32.totalorder %s185, %s186
      %p197 = scmp.eq.s32.totalorder %s25, 0
      %p198 = por %p196, %p197
      %p199 = scmp.ne.s32.totalorder %s185, %s186
      %p200 = scmp.eq.s32.totalorder %s26, 1
      %p201 = por %p199, %p200
      %p203 = scmp.ne.s32.totalorder %s186, %s202
      %p204 = scmp.eq.s32.totalorder %s26, 0
      %p205 = por %p203, %p204
      %p206 = scmp.le.s32.totalorder 1, %s20
      %p207 = scmp.lt.s32.totalorder %s20, 3
      %p208 = pnand %p206, %p207
      %p209 = pneg %p208
      // Predicated region
      $region9: #{tpu_custom_call.1} parent=5 // pred_check
        _
      $region10: #{tpu_custom_call.1} parent=5 // pred_check_branch
        %211 = sbr.rel (%p208) target = $region12
      $region11: #{tpu_custom_call.1} parent=5 // pred_region
        %s212 = ssub.s32 %s20, 1
        // Predicated region
        $region13: #{tpu_custom_call.1} parent=11 // pred_check
          %p213 = pneg %p67
        $region14: #{tpu_custom_call.1} parent=11 // pred_check_branch
          %215 = sbr.rel (%p213) target = $region16
        $region15: #{tpu_custom_call.1} parent=11 // pred_region
          _
        $region16: #{tpu_custom_call.1} parent=11 // pred_fallthru
          _
        // Predicated region
        $region17: #{tpu_custom_call.1} parent=11 // pred_check
          %p216 = pneg %p88
        $region18: #{tpu_custom_call.1} parent=11 // pred_check_branch
          %218 = sbr.rel (%p216) target = $region20
        $region19: #{tpu_custom_call.1} parent=11 // pred_region
          _
        $region20: #{tpu_custom_call.1} parent=11 // pred_fallthru
          _
        // Predicated region
        $region21: #{tpu_custom_call.1} parent=11 // pred_check
          %p219 = pneg %p109
        $region22: #{tpu_custom_call.1} parent=11 // pred_check_branch
          %221 = sbr.rel (%p219) target = $region24
        $region23: #{tpu_custom_call.1} parent=11 // pred_region
          %s223 = ssub.s32 1024, 1024
          %224 = vsyncadd [#allocation6], %s223
          %s225 = sshll.u32 [#allocation5], 4
          %s226 = int_to_ptr.vmem [resolvable:$true] %s225
          %231 = dma.hbm_to_vmem [thread:$0]  %s3, 1024, %s226, [#allocation6], 64, 64, 4
        $region24: #{tpu_custom_call.1} parent=11 // pred_fallthru
          _
        // Predicated region
        $region25: #{tpu_custom_call.1} parent=11 // pred_check
          %p232 = pneg %p130
        $region26: #{tpu_custom_call.1} parent=11 // pred_check_branch
          %234 = sbr.rel (%p232) target = $region28
        $region27: #{tpu_custom_call.1} parent=11 // pred_region
          _
        $region28: #{tpu_custom_call.1} parent=11 // pred_fallthru
          _
        // Predicated region
        $region29: #{tpu_custom_call.1} parent=11 // pred_check
          %p235 = pneg %p151
        $region30: #{tpu_custom_call.1} parent=11 // pred_check_branch
          %237 = sbr.rel (%p235) target = $region32
        $region31: #{tpu_custom_call.1} parent=11 // pred_region
          %s239 = ssub.s32 1024, 1024
          %240 = vsyncadd [#allocation6], %s239
          %s241 = sshll.u32 [#allocation7], 4
          %s242 = int_to_ptr.vmem [resolvable:$true] %s241
          %247 = dma.hbm_to_vmem [thread:$0]  %s5, 1024, %s242, [#allocation6], 64, 64, 4
        $region32: #{tpu_custom_call.1} parent=11 // pred_fallthru
          _
        // Predicated region
        $region33: #{tpu_custom_call.1} parent=11 // pred_check
          %p248 = pneg %p172
        $region34: #{tpu_custom_call.1} parent=11 // pred_check_branch
          %250 = sbr.rel (%p248) target = $region36
        $region35: #{tpu_custom_call.1} parent=11 // pred_region
          _
        $region36: #{tpu_custom_call.1} parent=11 // pred_fallthru
          _
      $region12: #{tpu_custom_call.1} parent=5 // pred_fallthru
        _
      %p251 = scmp.lt.s32.totalorder %s20, 2
      // Predicated region
      $region37: #{tpu_custom_call.1} parent=5 // pred_check
        %p252 = pneg %p251
      $region38: #{tpu_custom_call.1} parent=5 // pred_check_branch
        %254 = sbr.rel (%p252) target = $region40
      $region39: #{tpu_custom_call.1} parent=5 // pred_region
        // Predicated region
        $region41: #{tpu_custom_call.1} parent=39 // pred_check
          %p255 = pneg %p40
        $region42: #{tpu_custom_call.1} parent=39 // pred_check_branch
          %257 = sbr.rel (%p255) target = $region44
        $region43: #{tpu_custom_call.1} parent=39 // pred_region
          %s258 = sand.u32 %s30, 1
          %s259 = scalar_lea.sflag [#allocation3], %s258
          %s260 = sand.u32 %s30, 1
          %s261 = smul.addr %s260, 8
          %s262 = scalar_lea.vmem [#allocation2], %s261
          %s264 = ssub.s32 128, 128
          %265 = vsyncadd %s259, %s264
          %s266 = smul.addr %s20, 128
          %s267 = scalar_lea.hbm %s0, %s266
          %s269 = sshll.u32 %s262, 4
          %s270 = int_to_ptr.vmem [resolvable:$true] %s269
          %272 = dma.hbm_to_vmem [thread:$0]  %s267, 128, %s270, %s259
        $region44: #{tpu_custom_call.1} parent=39 // pred_fallthru
          _
      $region40: #{tpu_custom_call.1} parent=5 // pred_fallthru
        _
      %p273 = scmp.le.s32.totalorder 1, %s20
      %p274 = scmp.lt.s32.totalorder %s20, 3
      %p275 = pnand %p273, %p274
      %p276 = pneg %p275
      // Predicated region
      $region45: #{tpu_custom_call.1} parent=5 // pred_check
        _
      $region46: #{tpu_custom_call.1} parent=5 // pred_check_branch
        %278 = sbr.rel (%p275) target = $region48
      $region47: #{tpu_custom_call.1} parent=5 // pred_region
        %s279 = ssub.s32 %s20, 1
        %s280 = sand.u32 %s33, 1
        %s281 = scalar_lea.sflag [#allocation3], %s280
        %s282 = sand.u32 %s33, 1
        %s283 = smul.addr %s282, 8
        %s284 = scalar_lea.vmem [#allocation2], %s283
        // Predicated region
        $region49: #{tpu_custom_call.1} parent=47 // pred_check
          %p285 = pneg %p46
        $region50: #{tpu_custom_call.1} parent=47 // pred_check_branch
          %287 = sbr.rel (%p285) target = $region52
        $region51: #{tpu_custom_call.1} parent=47 // pred_region
          %288 = dma.done %s281, 128
        $region52: #{tpu_custom_call.1} parent=47 // pred_fallthru
          _
        // Predicated region
        $region53: #{tpu_custom_call.1} parent=47 // pred_check
          %p289 = pneg %p109
        $region54: #{tpu_custom_call.1} parent=47 // pred_check_branch
          %291 = sbr.rel (%p289) target = $region56
        $region55: #{tpu_custom_call.1} parent=47 // pred_region
          %292 = dma.done [#allocation6], 1024
        $region56: #{tpu_custom_call.1} parent=47 // pred_fallthru
          _
        // Predicated region
        $region57: #{tpu_custom_call.1} parent=47 // pred_check
          %p293 = pneg %p151
        $region58: #{tpu_custom_call.1} parent=47 // pred_check_branch
          %295 = sbr.rel (%p293) target = $region60
        $region59: #{tpu_custom_call.1} parent=47 // pred_region
          %296 = dma.done [#allocation6], 1024
        $region60: #{tpu_custom_call.1} parent=47 // pred_fallthru
          _
        %s297 = sand.u32 %s33, 1
        %s298 = scalar_lea.sflag [#allocation3], %s297
        %s299 = sand.u32 %s33, 1
        %s300 = smul.addr %s299, 8
        %s301 = scalar_lea.vmem [#allocation2], %s300
        %p302 = pneg %p46
        %p303 = pneg %p43
        %p304 = pneg %p67
        %p305 = pneg %p64
        %p306 = pneg %p88
        %p307 = pneg %p85
        %p308 = pneg %p109
        %p309 = pneg %p106
        %p310 = pneg %p130
        %p311 = pneg %p127
        %p312 = pneg %p151
        %p313 = pneg %p148
        %p314 = pneg %p172
        %p315 = pneg %p169
        %p316 = pneg %p198
        %p317 = pneg %p195
        %s318 = sand.u32 %s185, 1
        %s319 = scalar_lea.sflag [#allocation4], %s318
        %s320 = sand.u32 %s185, 1
        %s321 = smul.addr %s320, 8
        %s322 = scalar_lea.vmem [#allocation8], %s321
        %v324 = vld [vmem:[%s284] sm:$0xff]
        %v325 = vld [vmem:[%s1] sm:$0x1]
        %v326 = vld [vmem:[%s2] sm:$0x1]
        %327 = vadd.xlane.f32.xlu0 %v324
        %v328 = vpop.xlane.xlu0 %327
        %v329 = vmul.f32 %v328, 0.03125
        %v330 = vsub.f32 %v324, %v329
        %v331 = vlaneseq
        %v332 = vand.u32 %v331, 127
        %vm333 = vcmp.lt.s32.totalorder %v332, 32
        %v334 = vsel %vm333, %v330, 0.0
        %v335 = vmul.f32 %v334, %v334
        %336 = vadd.xlane.f32.xlu0 %v335
        %v337 = vpop.xlane.xlu0 %336
        %v338 = vmul.f32 %v337, 0.03125
        %v339 = vadd.f32 %v338, 1e-05
        %v340 = vrsqrt.pop %v339
        %v341 = vmul.f32 %v334, %v340
        %v343 = vlaneseq
        %v344 = vshrl.u32 %v343, 7
        %v345 = vsub.s32 0, %v344
        %v346 = vrot.slane %v325, %v345
        %v348 = vmul.f32 %v341, %v346
        %v350 = vlaneseq
        %v351 = vshrl.u32 %v350, 7
        %v352 = vsub.s32 0, %v351
        %v353 = vrot.slane %v326, %v352
        %v355 = vadd.f32 %v348, %v353
        %v356 = vpack.c.bf16 %v355, %v355
        %v357 = vld [vmem:[#allocation5] sm:$0xf]
        %v358 = vld [vmem:[#allocation5 + $0x4] sm:$0xf]
        %v359 = vld [vmem:[#allocation5 + $0x8] sm:$0xf]
        %v360 = vld [vmem:[#allocation5 + $0xc] sm:$0xf]
        %v361 = vld [vmem:[#allocation5 + $0x10] sm:$0xf]
        %v362 = vld [vmem:[#allocation5 + $0x14] sm:$0xf]
        %v363 = vld [vmem:[#allocation5 + $0x18] sm:$0xf]
        %v364 = vld [vmem:[#allocation5 + $0x1c] sm:$0xf]
        %v365 = vld [vmem:[#allocation5 + $0x20] sm:$0xf]
        %v366 = vld [vmem:[#allocation5 + $0x24] sm:$0xf]
        %v367 = vld [vmem:[#allocation5 + $0x28] sm:$0xf]
        %v368 = vld [vmem:[#allocation5 + $0x2c] sm:$0xf]
        %v369 = vld [vmem:[#allocation5 + $0x30] sm:$0xf]
        %v370 = vld [vmem:[#allocation5 + $0x34] sm:$0xf]
        %v371 = vld [vmem:[#allocation5 + $0x38] sm:$0xf]
        %v372 = vld [vmem:[#allocation5 + $0x3c] sm:$0xf]
        %v373 = vld [vmem:[%s4] sm:$0x1]
        %v375 = vlaneseq
        %v376 = vshrl.u32 %v375, 7
        %v377 = vsub.s32 0, %v376
        %v378 = vrot.slane %v373, %v377
        %v396 = vunpack.c.l.b16 %v357
        %v397 = vunpack.c.l.b16 %v358
        %v398 = vunpack.c.l.b16 %v359
        %v399 = vunpack.c.l.b16 %v360
        %v400 = vunpack.c.l.b16 %v361
        %v401 = vunpack.c.l.b16 %v362
        %v402 = vunpack.c.l.b16 %v363
        %v403 = vunpack.c.l.b16 %v364
        %v404 = vunpack.c.l.b16 %v365
        %v405 = vunpack.c.l.b16 %v366
        %v406 = vunpack.c.l.b16 %v367
        %v407 = vunpack.c.l.b16 %v368
        %v408 = vunpack.c.l.b16 %v369
        %v409 = vunpack.c.l.b16 %v370
        %v410 = vunpack.c.l.b16 %v371
        %v411 = vunpack.c.l.b16 %v372
        %v412 = vpack.c.b16 %v397, %v396
        %v413 = vpack.c.b16 %v399, %v398
        %v414 = vpack.c.b16 %v401, %v400
        %v415 = vpack.c.b16 %v403, %v402
        %v416 = vpack.c.b16 %v405, %v404
        %v417 = vpack.c.b16 %v407, %v406
        %v418 = vpack.c.b16 %v409, %v408
        %v419 = vpack.c.b16 %v411, %v410
        %428 = vmatprep.subr.bf16.mxu0 0
        %429 = vmatpush1.bf16.msra.mxu0 %v419
        %430 = vmatprep.subr.bf16.mxu0 0
        %431 = vmatpush1.bf16.msra.mxu0 %v418
        %432 = vmatprep.subr.bf16.mxu0 0
        %433 = vmatpush1.bf16.msra.mxu0 %v417
        %434 = vmatprep.subr.bf16.mxu0 0
        %435 = vmatpush1.bf16.msra.mxu0 %v416
        %436 = vmatprep.subr.bf16.mxu0 0
        %437 = vmatpush1.bf16.msra.mxu0 %v415
        %438 = vmatprep.subr.bf16.mxu0 0
        %439 = vmatpush1.bf16.msra.mxu0 %v414
        %440 = vmatprep.subr.bf16.mxu0 0
        %441 = vmatpush1.bf16.msra.mxu0 %v413
        %442 = vmatprep.subr.bf16.mxu0 0
        %443 = vmatpush1.bf16.msra.mxu0 %v412
        %444 = vmatprep.subr.bf16.mxu0 0
        %445 = vmatpush2.bf16.msra.mxu0 0
        %446 = vmatprep.subr.bf16.mxu0 0
        %447 = vmatpush2.bf16.msra.mxu0 0
        %448 = vmatprep.subr.bf16.mxu0 0
        %449 = vmatpush2.bf16.msra.mxu0 0
        %450 = vmatprep.subr.bf16.mxu0 0
        %451 = vmatpush2.bf16.msra.mxu0 0
        %452 = vmatprep.subr.bf16.mxu0 0
        %453 = vmatpush2.bf16.msra.mxu0 0
        %454 = vmatprep.subr.bf16.mxu0 0
        %455 = vmatpush2.bf16.msra.mxu0 0
        %456 = vmatprep.subr.bf16.mxu0 0
        %457 = vmatpush2.bf16.msra.mxu0 0
        %458 = vmatprep.subr.bf16.mxu0 0
        %459 = vmatpush2.bf16.msra.mxu0 0
        %460 = vmatprep.mubr.bf16.mxu0 0
        %461 = vmatmul.mubr.bf16.gmra.mxu0 %v356
        %v462 = vpop.f32.mrf.mxu0
        %v463 = vadd.f32 %v378, %v462
        %v464 = vpop.f32.mrf.mxu0
        %v465 = vpop.f32.mrf.mxu0
        %v466 = vpop.f32.mrf.mxu0
        %467 = vdwg.mxu0
        %v468 = vmul.f32 %v463, 0.5
        %v469 = vmul.f32 %v463, 0.70710677
        %v470 = verf.f32.pop %v469
        %v471 = vadd.f32 %v470, 1.0
        %v472 = vmul.f32 %v468, %v471
        %v473 = vpack.c.bf16 %v472, %v472
        %v474 = vld [vmem:[#allocation7] sm:$0xf]
        %v475 = vld [vmem:[#allocation7 + $0x4] sm:$0xf]
        %v476 = vld [vmem:[#allocation7 + $0x8] sm:$0xf]
        %v477 = vld [vmem:[#allocation7 + $0xc] sm:$0xf]
        %v478 = vld [vmem:[#allocation7 + $0x10] sm:$0xf]
        %v479 = vld [vmem:[#allocation7 + $0x14] sm:$0xf]
        %v480 = vld [vmem:[#allocation7 + $0x18] sm:$0xf]
        %v481 = vld [vmem:[#allocation7 + $0x1c] sm:$0xf]
        %v482 = vld [vmem:[#allocation7 + $0x20] sm:$0xf]
        %v483 = vld [vmem:[#allocation7 + $0x24] sm:$0xf]
        %v484 = vld [vmem:[#allocation7 + $0x28] sm:$0xf]
        %v485 = vld [vmem:[#allocation7 + $0x2c] sm:$0xf]
        %v486 = vld [vmem:[#allocation7 + $0x30] sm:$0xf]
        %v487 = vld [vmem:[#allocation7 + $0x34] sm:$0xf]
        %v488 = vld [vmem:[#allocation7 + $0x38] sm:$0xf]
        %v489 = vld [vmem:[#allocation7 + $0x3c] sm:$0xf]
        %v490 = vld [vmem:[%s6] sm:$0x1]
        %v492 = vlaneseq
        %v493 = vshrl.u32 %v492, 7
        %v494 = vsub.s32 0, %v493
        %v495 = vrot.slane %v490, %v494
        %v513 = vunpack.c.l.b16 %v474
        %v514 = vunpack.c.l.b16 %v475
        %v515 = vunpack.c.l.b16 %v476
        %v516 = vunpack.c.l.b16 %v477
        %v517 = vunpack.c.l.b16 %v478
        %v518 = vunpack.c.l.b16 %v479
        %v519 = vunpack.c.l.b16 %v480
        %v520 = vunpack.c.l.b16 %v481
        %v521 = vunpack.c.l.b16 %v482
        %v522 = vunpack.c.l.b16 %v483
        %v523 = vunpack.c.l.b16 %v484
        %v524 = vunpack.c.l.b16 %v485
        %v525 = vunpack.c.l.b16 %v486
        %v526 = vunpack.c.l.b16 %v487
        %v527 = vunpack.c.l.b16 %v488
        %v528 = vunpack.c.l.b16 %v489
        %v529 = vpack.c.b16 %v514, %v513
        %v530 = vpack.c.b16 %v516, %v515
        %v531 = vpack.c.b16 %v518, %v517
        %v532 = vpack.c.b16 %v520, %v519
        %v533 = vpack.c.b16 %v522, %v521
        %v534 = vpack.c.b16 %v524, %v523
        %v535 = vpack.c.b16 %v526, %v525
        %v536 = vpack.c.b16 %v528, %v527
        %545 = vmatprep.subr.bf16.mxu0 0
        %546 = vmatpush1.bf16.msra.mxu0 %v536
        %547 = vmatprep.subr.bf16.mxu0 0
        %548 = vmatpush1.bf16.msra.mxu0 %v535
        %549 = vmatprep.subr.bf16.mxu0 0
        %550 = vmatpush1.bf16.msra.mxu0 %v534
        %551 = vmatprep.subr.bf16.mxu0 0
        %552 = vmatpush1.bf16.msra.mxu0 %v533
        %553 = vmatprep.subr.bf16.mxu0 0
        %554 = vmatpush1.bf16.msra.mxu0 %v532
        %555 = vmatprep.subr.bf16.mxu0 0
        %556 = vmatpush1.bf16.msra.mxu0 %v531
        %557 = vmatprep.subr.bf16.mxu0 0
        %558 = vmatpush1.bf16.msra.mxu0 %v530
        %559 = vmatprep.subr.bf16.mxu0 0
        %560 = vmatpush1.bf16.msra.mxu0 %v529
        %561 = vmatprep.subr.bf16.mxu0 0
        %562 = vmatpush2.bf16.msra.mxu0 0
        %563 = vmatprep.subr.bf16.mxu0 0
        %564 = vmatpush2.bf16.msra.mxu0 0
        %565 = vmatprep.subr.bf16.mxu0 0
        %566 = vmatpush2.bf16.msra.mxu0 0
        %567 = vmatprep.subr.bf16.mxu0 0
        %568 = vmatpush2.bf16.msra.mxu0 0
        %569 = vmatprep.subr.bf16.mxu0 0
        %570 = vmatpush2.bf16.msra.mxu0 0
        %571 = vmatprep.subr.bf16.mxu0 0
        %572 = vmatpush2.bf16.msra.mxu0 0
        %573 = vmatprep.subr.bf16.mxu0 0
        %574 = vmatpush2.bf16.msra.mxu0 0
        %575 = vmatprep.subr.bf16.mxu0 0
        %576 = vmatpush2.bf16.msra.mxu0 0
        %577 = vmatprep.mubr.bf16.mxu0 0
        %578 = vmatmul.mubr.bf16.gmra.mxu0 %v473
        %v579 = vpop.f32.mrf.mxu0
        %v580 = vadd.f32 %v495, %v579
        %v581 = vpop.f32.mrf.mxu0
        %v582 = vpop.f32.mrf.mxu0
        %v583 = vpop.f32.mrf.mxu0
        %584 = vdwg.mxu0
        %585 = vst [vmem:[%s322] sm:$0xff] %v580
        %s586 = sand.u32 %s185, 1
        %s587 = scalar_lea.sflag [#allocation4], %s586
        %s588 = sand.u32 %s185, 1
        %s589 = smul.addr %s588, 8
        %s590 = scalar_lea.vmem [#allocation8], %s589
        // Predicated region
        $region61: #{tpu_custom_call.1} parent=47 // pred_check
          %p591 = pneg %p195
        $region62: #{tpu_custom_call.1} parent=47 // pred_check_branch
          %593 = sbr.rel (%p591) target = $region64
        $region63: #{tpu_custom_call.1} parent=47 // pred_region
          %s595 = ssub.s32 128, 128
          %596 = vsyncadd %s587, %s595
          %s597 = smul.addr %s25, 128
          %s598 = scalar_lea.hbm %s7, %s597
          %s600 = sshll.u32 %s590, 4
          %s601 = int_to_ptr.vmem [resolvable:$true] %s600
          %603 = dma.vmem_to_hbm [thread:$0]  %s601, 128, %s598, %s587
        $region64: #{tpu_custom_call.1} parent=47 // pred_fallthru
          _
      $region48: #{tpu_custom_call.1} parent=5 // pred_fallthru
        _
      %p604 = scmp.le.s32.totalorder 2, %s20
      // Predicated region
      $region65: #{tpu_custom_call.1} parent=5 // pred_check
        %p605 = pneg %p604
      $region66: #{tpu_custom_call.1} parent=5 // pred_check_branch
        %607 = sbr.rel (%p605) target = $region68
      $region67: #{tpu_custom_call.1} parent=5 // pred_region
        %s608 = ssub.s32 %s20, 2
        // Predicated region
        $region69: #{tpu_custom_call.1} parent=67 // pred_check
          %p609 = pneg %p201
        $region70: #{tpu_custom_call.1} parent=67 // pred_check_branch
          %611 = sbr.rel (%p609) target = $region72
        $region71: #{tpu_custom_call.1} parent=67 // pred_region
          %s612 = sand.u32 %s186, 1
          %s613 = scalar_lea.sflag [#allocation4], %s612
          %s614 = sand.u32 %s186, 1
          %s615 = smul.addr %s614, 8
          %s616 = scalar_lea.vmem [#allocation8], %s615
          %617 = dma.done %s613, 128
        $region72: #{tpu_custom_call.1} parent=67 // pred_fallthru
          _
      $region68: #{tpu_custom_call.1} parent=5 // pred_fallthru
        _
    $region6: #{tpu_custom_call.1} parent=1 // loop_footer
      %s24 = sadd.s32 1, %s20
    $region7: #{tpu_custom_call.1} parent=1 // loop_footer_branch
      %19 = sbr.rel target = $region3
    $region8: #{tpu_custom_call.1} parent=1 // loop_exit
      _
    %618 = vsyncpa [#allocation3], 1
    %s619 = scalar_lea.sflag [#allocation3], 1
    %620 = vsyncpa %s619, 1
    %621 = vsyncpa [#allocation6], 1
    %622 = vsyncpa [#allocation4], 1
    %s623 = scalar_lea.sflag [#allocation4], 1
    %624 = vsyncpa %s623, 1

</llo_original>
